<compile_context>
chip_gen: v6e
topology: v6e:2x2x1
jax: 0.10.0
libtpu: 0.0.40
codegen_flags: <defaults>
</compile_context>

<pallas_src>
import jax
import jax.numpy as jnp
from jax.experimental import pallas as pl
from jax.experimental.pallas import tpu as pltpu


def _round_up(x, m):
    return ((x + m - 1) // m) * m


def _vmem_budget_bytes():
    """~75% of physical per-core VMEM; 48 MiB fallback is safe on v5e/v6e/v7x."""
    try:
        cap = getattr(pltpu.get_tpu_info(), "vmem_capacity_bytes", None)
        if cap:
            return int(0.75 * cap)
    except Exception:
        pass
    return 48 << 20


def _down_wt_kernel(x_ref, w_ref, scale_ref, shift_ref, o_ref):
    # Haar 2x2 combine + 1x1 conv are folded into w_ref on the host, so the body is one
    # MXU matmul; eval-mode BN (+ conv bias) is an f32 scale/shift epilogue + ReLU.
    y = jnp.dot(x_ref[...], w_ref[...], preferred_element_type=jnp.float32)
    y = y * scale_ref[...] + shift_ref[...]
    o_ref[...] = jnp.maximum(y, 0.0).astype(o_ref.dtype)


def down_wt_forward(x, conv_w, conv_b, bn_gamma, bn_beta, bn_mean, bn_var,
                    eps=1e-5, tm=1024, matmul_dtype=None):
    """Forward pass of Down_wt.

    x: (N, C_in, H, W) NCHW; returns (N, C_out, H/2, W/2) in x.dtype.
    matmul_dtype: dtype fed to the MXU. Defaults to bfloat16 when x is float32
                  (op is HBM-bound; accumulation is always float32).
    """
    N, C, H, W = x.shape
    assert H % 2 == 0 and W % 2 == 0, "Haar J=1 with even spatial dims"
    H2, W2 = H // 2, W // 2
    out_ch = conv_w.shape[0]
    assert conv_w.shape[1] == 4 * C and conv_w.shape[2:] == (1, 1)
    M = N * H2 * W2
    K = 4 * C

    if matmul_dtype is None:
        matmul_dtype = jnp.bfloat16 if x.dtype == jnp.float32 else x.dtype

    # ---- glue: single contiguous (M, 4C) corner slab, corner-major (a, b, c, d) ----
    # a=(2i,2j), b=(2i,2j+1), c=(2i+1,2j), d=(2i+1,2j+1).  One relayout; the bf16 cast
    # rides it for free.  allow_input_fusion below lets XLA fold this relayout into the
    # kernel's input path when it can.
    slab = (x.reshape(N, C, H2, 2, W2, 2)
              .transpose(0, 2, 4, 3, 5, 1)            # (N, H2, W2, 2, 2, C)
              .reshape(M, K)
              .astype(matmul_dtype))

    # ---- glue: fold Haar sign matrix into the 1x1-conv weight (BN stays in epilogue) ----
    # DWTForward(haar, J=1, 'zero') band order = [LL, (loW,hiH), (hiW,loH), (hiW,hiH)]:
    #   LL = .5(a+b+c+d), yH0 = .5(a+b-c-d), yH1 = .5(a-b+c-d), yH2 = .5(a-b-c+d)
    S = 0.5 * jnp.array([[1.,  1.,  1.,  1.],
                         [1.,  1., -1., -1.],
                         [1., -1.,  1., -1.],
                         [1., -1., -1.,  1.]], dtype=jnp.float32)     # (band, corner)
    w4 = conv_w.reshape(out_ch, 4, C).astype(jnp.float32)             # (o, band, ch)
    # W[corner*C + ch, o] = sum_band S[band, corner] * w4[o, band, ch]
    w_mat = jnp.einsum('bk,obc->kco', S, w4).reshape(K, out_ch)

    # Eval-mode BatchNorm affine (+ conv bias), applied in f32 inside the kernel epilogue.
    # TODO(synk): training-mode BatchNorm (batch statistics) not implemented; eval-mode only.
    scale = bn_gamma.astype(jnp.float32) / jnp.sqrt(bn_var.astype(jnp.float32) + eps)
    shift = (conv_b.astype(jnp.float32) - bn_mean.astype(jnp.float32)) * scale \
            + bn_beta.astype(jnp.float32)

    # ---- pad out_ch to a lane-dense multiple of 128 (unmasked stores, full MXU N) ----
    out_ch_p = _round_up(out_ch, 128)
    pad = out_ch_p - out_ch
    w_mat = jnp.pad(w_mat, ((0, 0), (0, pad))).astype(matmul_dtype)    # (K, out_ch_p)
    scale = jnp.pad(scale, (0, pad)).reshape(1, out_ch_p)
    shift = jnp.pad(shift, (0, pad)).reshape(1, out_ch_p)

    in_item = jnp.dtype(matmul_dtype).itemsize
    out_item = jnp.dtype(x.dtype).itemsize

    # ---- row tiling from a generation-aware VMEM budget ----
    budget = _vmem_budget_bytes()
    fixed = 2 * (K * out_ch_p * in_item + 2 * out_ch_p * 4)   # dbl-buffered weight/scale/shift
    per_row = 2 * (K * in_item + out_ch_p * out_item)         # dbl-buffered input/output rows
    headroom = 4 << 20
    tm_budget = max(8, ((budget - headroom - fixed) // per_row) // 8 * 8)
    tm_eff = max(8, min(tm, tm_budget, _round_up(M, 8)))
    # Use both TensorCores on v7x: keep at least 2 "parallel" grid tiles when possible.
    if M > 8 and pl.cdiv(M, tm_eff) < 2:
        tm_eff = max(8, _round_up(pl.cdiv(M, 2), 8))
    grid = (pl.cdiv(M, tm_eff),)

    vmem_limit = int(min(max(fixed + tm_eff * per_row + headroom, 16 << 20), budget))

    cost = pl.CostEstimate(
        flops=2 * M * K * out_ch_p,
        transcendentals=0,
        bytes_accessed=(M * K * in_item + K * out_ch_p * in_item
                        + M * out_ch_p * out_item + 2 * out_ch_p * 4))

    # NOTE: a partial last M tile relies on Pallas masking out-of-bounds output rows of the
    # padded block (garbage rows flow through matmul/relu but are never stored).
    out_flat = pl.pallas_call(
        _down_wt_kernel,
        out_shape=jax.ShapeDtypeStruct((M, out_ch_p), x.dtype),
        grid_spec=pltpu.PrefetchScalarGridSpec(
            num_scalar_prefetch=0,
            grid=grid,
            in_specs=[
                pl.BlockSpec((tm_eff, K), lambda i: (i, 0)),
                pl.BlockSpec((K, out_ch_p), lambda i: (0, 0)),
                pl.BlockSpec((1, out_ch_p), lambda i: (0, 0)),
                pl.BlockSpec((1, out_ch_p), lambda i: (0, 0)),
            ],
            out_specs=pl.BlockSpec((tm_eff, out_ch_p), lambda i: (i, 0)),
        ),
        compiler_params=pltpu.CompilerParams(
            dimension_semantics=("parallel",),
            vmem_limit_bytes=vmem_limit,
            allow_input_fusion=[True, False, False, False]),
        cost_estimate=cost,
    )(slab, w_mat, scale, shift)

    # Channel un-pad fuses into the NHWC->NCHW relayout below.
    out = out_flat[:, :out_ch].reshape(N, H2, W2, out_ch)
    return jnp.transpose(out, (0, 3, 1, 2))             # NCHW, matching the PyTorch module


def _reference(x, conv_w, conv_b, bn_gamma, bn_beta, bn_mean, bn_var, eps=1e-5):
    """Pure-JAX reference of the same forward pass (for verification)."""
    C = x.shape[1]
    a = x[:, :, 0::2, 0::2]
    b = x[:, :, 0::2, 1::2]
    c = x[:, :, 1::2, 0::2]
    d = x[:, :, 1::2, 1::2]
    ll = (a + b + c + d) * 0.5
    b1 = (a + b - c - d) * 0.5
    b2 = (a - b + c - d) * 0.5
    b3 = (a - b - c + d) * 0.5
    xcat = jnp.concatenate([ll, b1, b2, b3], axis=1)        # (N, 4C, H/2, W/2)
    w = conv_w.reshape(conv_w.shape[0], 4 * C)
    y = jnp.einsum('ok,nkhw->nohw', w, xcat,
                   precision=jax.lax.Precision.HIGHEST) + conv_b[None, :, None, None]
    scale = bn_gamma / jnp.sqrt(bn_var + eps)
    y = (y - bn_mean[None, :, None, None]) * scale[None, :, None, None] \
        + bn_beta[None, :, None, None]
    return jnp.maximum(y, 0.0)


if __name__ == "__main__":
    N, in_ch, out_ch, H, W = 2, 4, 8, 16, 16

    key = jax.random.PRNGKey(0)
    kx, kw, kb = jax.random.split(key, 3)
    x = jax.random.normal(kx, (N, in_ch, H, W), dtype=jnp.float32)

    # Deterministic synthetic params (shapes per nn.Conv2d(in_ch*4, out_ch, 1) + BN).
    conv_w = jax.random.normal(kw, (out_ch, 4 * in_ch, 1, 1), dtype=jnp.float32) * 0.1
    conv_b = jax.random.normal(kb, (out_ch,), dtype=jnp.float32) * 0.1
    bn_gamma = jnp.ones((out_ch,), jnp.float32)
    bn_beta = jnp.zeros((out_ch,), jnp.float32)
    bn_mean = jnp.zeros((out_ch,), jnp.float32)
    bn_var = jnp.ones((out_ch,), jnp.float32)

    fwd = jax.jit(down_wt_forward, static_argnames=("eps", "tm", "matmul_dtype"))
    ref = _reference(x, conv_w, conv_b, bn_gamma, bn_beta, bn_mean, bn_var)

    # Default path: bf16 MXU feed (the HBM-bandwidth lever), f32 accumulation.
    out = jax.block_until_ready(fwd(x, conv_w, conv_b, bn_gamma, bn_beta, bn_mean, bn_var))
    assert out.shape == (N, out_ch, H // 2, W // 2)
    assert jnp.allclose(out, ref, atol=5e-2, rtol=5e-2), "mismatch vs reference (bf16 feed)"

    # Explicit f32 MXU feed: tight tolerance (BN scale/shift are in the f32 epilogue).
    out_f32 = jax.block_until_ready(
        fwd(x, conv_w, conv_b, bn_gamma, bn_beta, bn_mean, bn_var,
            matmul_dtype=jnp.float32))
    assert jnp.allclose(out_f32, ref, atol=1e-4, rtol=1e-4), "mismatch vs reference (f32 feed)"

    print("KERNEL_OK")
</pallas_src>

<mosaic_0001>
module attributes {stable_mosaic.version = 11 : i64} {
  func.func @_down_wt_kernel(%arg0: i32, %arg1: memref<64x16xbf16, #tpu.memory_space<vmem>>, %arg2: memref<16x128xbf16, #tpu.memory_space<vmem>>, %arg3: memref<1x128xf32, #tpu.memory_space<vmem>>, %arg4: memref<1x128xf32, #tpu.memory_space<vmem>>, %arg5: memref<64x128xf32, #tpu.memory_space<vmem>>) attributes {dimension_semantics = [#tpu.dimension_semantics<parallel>], iteration_bounds = array<i64: 2>, scalar_prefetch = 0 : i64, scratch_operands = 0 : i64, tpu.core_type = #tpu.core_type<tc>, window_params = [{transform_indices = @transform_0, window_bounds = array<i64: 64, 16>}, {pipeline_mode = #tpu.pipeline_mode<synchronous>, transform_indices = @transform_1, window_bounds = array<i64: 16, 128>}, {pipeline_mode = #tpu.pipeline_mode<synchronous>, transform_indices = @transform_2, window_bounds = array<i64: 1, 128>}, {pipeline_mode = #tpu.pipeline_mode<synchronous>, transform_indices = @transform_3, window_bounds = array<i64: 1, 128>}, {transform_indices = @transform_4, window_bounds = array<i64: 64, 128>}]} {
    %c0 = arith.constant 0 : index
    %c0_0 = arith.constant 0 : index
    %0 = vector.load %arg1[%c0, %c0_0] : memref<64x16xbf16, #tpu.memory_space<vmem>>, vector<64x16xbf16>
    %c0_1 = arith.constant 0 : index
    %c0_2 = arith.constant 0 : index
    %1 = vector.load %arg2[%c0_1, %c0_2] : memref<16x128xbf16, #tpu.memory_space<vmem>>, vector<16x128xbf16>
    %cst = arith.constant dense<0.000000e+00> : vector<64x128xf32>
    %2 = tpu.matmul %0, %1, %cst {dimension_numbers = #tpu.dot_dimension_numbers<[1], [0], [0], [1], [0, 0, 1, 1], [], []>} : vector<64x16xbf16>, vector<16x128xbf16>, vector<64x128xf32> -> vector<64x128xf32>
    %c0_3 = arith.constant 0 : index
    %c0_4 = arith.constant 0 : index
    %3 = vector.load %arg3[%c0_3, %c0_4] : memref<1x128xf32, #tpu.memory_space<vmem>>, vector<1x128xf32>
    %4 = vector.broadcast %3 : vector<1x128xf32> to vector<64x128xf32>
    %5 = arith.mulf %2, %4 : vector<64x128xf32>
    %c0_5 = arith.constant 0 : index
    %c0_6 = arith.constant 0 : index
    %6 = vector.load %arg4[%c0_5, %c0_6] : memref<1x128xf32, #tpu.memory_space<vmem>>, vector<1x128xf32>
    %7 = vector.broadcast %6 : vector<1x128xf32> to vector<64x128xf32>
    %8 = arith.addf %5, %7 : vector<64x128xf32>
    %cst_7 = arith.constant 0.000000e+00 : f32
    %9 = vector.broadcast %cst_7 : f32 to vector<64x128xf32>
    %10 = arith.maximumf %8, %9 : vector<64x128xf32>
    %c0_8 = arith.constant 0 : index
    %c0_9 = arith.constant 0 : index
    %11 = vector.load %arg5[%c0_8, %c0_9] : memref<64x128xf32, #tpu.memory_space<vmem>>, vector<64x128xf32>
    tpu.vector_store %arg5[%c0_8, %c0_9], %10 {strides = array<i32>} : memref<64x128xf32, #tpu.memory_space<vmem>>, vector<64x128xf32>,
    return
  }
  func.func @transform_0(%arg0: i32) -> (i32, i32) {
    %c0_i32 = arith.constant 0 : i32
    %c0_i32_0 = arith.constant 0 : i32
    return %arg0, %c0_i32 : i32, i32
  }
  func.func @transform_1(%arg0: i32) -> (i32, i32) {
    %c0_i32 = arith.constant 0 : i32
    %c0_i32_0 = arith.constant 0 : i32
    %c0_i32_1 = arith.constant 0 : i32
    return %c0_i32, %c0_i32_0 : i32, i32
  }
  func.func @transform_2(%arg0: i32) -> (i32, i32) {
    %c0_i32 = arith.constant 0 : i32
    %c0_i32_0 = arith.constant 0 : i32
    %c0_i32_1 = arith.constant 0 : i32
    return %c0_i32, %c0_i32_0 : i32, i32
  }
  func.func @transform_3(%arg0: i32) -> (i32, i32) {
    %c0_i32 = arith.constant 0 : i32
    %c0_i32_0 = arith.constant 0 : i32
    %c0_i32_1 = arith.constant 0 : i32
    return %c0_i32, %c0_i32_0 : i32, i32
  }
  func.func @transform_4(%arg0: i32) -> (i32, i32) {
    %c0_i32 = arith.constant 0 : i32
    %c0_i32_0 = arith.constant 0 : i32
    return %arg0, %c0_i32 : i32, i32
  }
}

</mosaic_0001>

<llo_original>
// kernel: down_wt_forward.1
$region0: #{down_wt_forward.1}
  #allocation0 [shape = 'u32[]', space=smem, size = 0x4, offset = 0x4, fixed_abs, tag = 'smem constant byte address 0x4 - core index']
  #allocation1 [shape = 'u32[144,128]{1,0:T(1,128)}', space=vmem, size = 0x12000, scoped, tag = 'internal scratch']
  %s0 = inlined_call_operand.vmem [shape: bf16[128,16], index: 0, kind: input, shape index: {}]
  %s1 = inlined_call_operand.vmem [shape: bf16[16,128], index: 1, kind: input, shape index: {}]
  %s2 = inlined_call_operand.vmem [shape: f32[1,128], index: 2, kind: input, shape index: {}]
  %s3 = inlined_call_operand.vmem [shape: f32[1,128], index: 3, kind: input, shape index: {}]
  %s4 = inlined_call_operand.vmem [shape: f32[128,128], index: 4, kind: output, shape index: {}]
  %s5 = sld [smem:[#allocation0]]
  $region49: #{down_wt_forward.1} parent=0
    _
  %s7 = ssub.s32 1, %s5
  %s8 = scalar_select 0, %s7, %s5
  loop: start=0, step=1, limit=4
  $region2: #{down_wt_forward.1} parent=0 // loop_pre_header
    _
  $region3: #{down_wt_forward.1} parent=0 // loop_header
    %s10 = sphi 0, %s14
    %p11 = scmp.ge.s32.totalorder %s10, 4
    %s20 = sphi 0, %s22
    %s23 = sphi 0, %s20
    %s24 = sphi 0, %s23
    %s40 = sphi 0, %s24
    %s44 = sphi 0, %s44
    %s46 = sphi 0, %s44
    %s47 = sphi 0, %s46
    %s61 = sphi 0, %s47
    %s65 = sphi 0, %s65
    %s67 = sphi 0, %s65
    %s68 = sphi 0, %s67
    %s82 = sphi 0, %s68
    %s86 = sphi 0, %s86
    %s88 = sphi 0, %s86
    %s89 = sphi 0, %s88
    %s103 = sphi 0, %s89
    %s109 = sphi 0, %s111
    %s112 = sphi 0, %s109
    %s113 = sphi 0, %s112
    %s129 = sphi 0, %s113
  $region4: #{down_wt_forward.1} parent=0 // loop_header_branch
    %13 = sbr.rel (%p11) target = $region8
  $region5: #{down_wt_forward.1} parent=0 // loop_body
    %s15 = ssub.s32 %s10, 1
    %s16 = ssub.s32 %s10, 2
    %s17 = sadd.s32 %s10, 1
    %s18 = ssub.s32 %s10, %s17
    %p19 = scmp.eq.s32.totalorder %s18, 0
    %s21 = sadd.s32 %s20, 1
    %s22 = scalar_select %p19, %s20, %s21
    %p25 = pneg %p19
    %p26 = scmp.eq.s32.totalorder %s10, 1
    %p27 = por %p25, %p26
    %p28 = scmp.ne.s32.totalorder %s20, %s23
    %p29 = scmp.eq.s32.totalorder %s10, 0
    %p30 = por %p28, %p29
    %p31 = scmp.ne.s32.totalorder %s20, %s23
    %p32 = scmp.eq.s32.totalorder %s15, 1
    %p33 = por %p31, %p32
    %p34 = scmp.ne.s32.totalorder %s23, %s24
    %p35 = scmp.eq.s32.totalorder %s15, 0
    %p36 = por %p34, %p35
    %p37 = scmp.ne.s32.totalorder %s23, %s24
    %p38 = scmp.eq.s32.totalorder %s16, 1
    %p39 = por %p37, %p38
    %p41 = scmp.ne.s32.totalorder %s24, %s40
    %p42 = scmp.eq.s32.totalorder %s16, 0
    %p43 = por %p41, %p42
    %s45 = sadd.s32 %s44, 1
    %p48 = scmp.eq.s32.totalorder %s10, 1
    %p49 = scmp.ne.s32.totalorder %s44, %s46
    %p50 = scmp.eq.s32.totalorder %s10, 0
    %p51 = por %p49, %p50
    %p52 = scmp.ne.s32.totalorder %s44, %s46
    %p53 = scmp.eq.s32.totalorder %s15, 1
    %p54 = por %p52, %p53
    %p55 = scmp.ne.s32.totalorder %s46, %s47
    %p56 = scmp.eq.s32.totalorder %s15, 0
    %p57 = por %p55, %p56
    %p58 = scmp.ne.s32.totalorder %s46, %s47
    %p59 = scmp.eq.s32.totalorder %s16, 1
    %p60 = por %p58, %p59
    %p62 = scmp.ne.s32.totalorder %s47, %s61
    %p63 = scmp.eq.s32.totalorder %s16, 0
    %p64 = por %p62, %p63
    %s66 = sadd.s32 %s65, 1
    %p69 = scmp.eq.s32.totalorder %s10, 1
    %p70 = scmp.ne.s32.totalorder %s65, %s67
    %p71 = scmp.eq.s32.totalorder %s10, 0
    %p72 = por %p70, %p71
    %p73 = scmp.ne.s32.totalorder %s65, %s67
    %p74 = scmp.eq.s32.totalorder %s15, 1
    %p75 = por %p73, %p74
    %p76 = scmp.ne.s32.totalorder %s67, %s68
    %p77 = scmp.eq.s32.totalorder %s15, 0
    %p78 = por %p76, %p77
    %p79 = scmp.ne.s32.totalorder %s67, %s68
    %p80 = scmp.eq.s32.totalorder %s16, 1
    %p81 = por %p79, %p80
    %p83 = scmp.ne.s32.totalorder %s68, %s82
    %p84 = scmp.eq.s32.totalorder %s16, 0
    %p85 = por %p83, %p84
    %s87 = sadd.s32 %s86, 1
    %p90 = scmp.eq.s32.totalorder %s10, 1
    %p91 = scmp.ne.s32.totalorder %s86, %s88
    %p92 = scmp.eq.s32.totalorder %s10, 0
    %p93 = por %p91, %p92
    %p94 = scmp.ne.s32.totalorder %s86, %s88
    %p95 = scmp.eq.s32.totalorder %s15, 1
    %p96 = por %p94, %p95
    %p97 = scmp.ne.s32.totalorder %s88, %s89
    %p98 = scmp.eq.s32.totalorder %s15, 0
    %p99 = por %p97, %p98
    %p100 = scmp.ne.s32.totalorder %s88, %s89
    %p101 = scmp.eq.s32.totalorder %s16, 1
    %p102 = por %p100, %p101
    %p104 = scmp.ne.s32.totalorder %s89, %s103
    %p105 = scmp.eq.s32.totalorder %s16, 0
    %p106 = por %p104, %p105
    %s107 = ssub.s32 %s10, %s17
    %p108 = scmp.eq.s32.totalorder %s107, 0
    %s110 = sadd.s32 %s109, 1
    %s111 = scalar_select %p108, %s109, %s110
    %p114 = pneg %p108
    %p115 = scmp.eq.s32.totalorder %s10, 1
    %p116 = por %p114, %p115
    %p117 = scmp.ne.s32.totalorder %s109, %s112
    %p118 = scmp.eq.s32.totalorder %s10, 0
    %p119 = por %p117, %p118
    %p120 = scmp.ne.s32.totalorder %s109, %s112
    %p121 = scmp.eq.s32.totalorder %s15, 1
    %p122 = por %p120, %p121
    %p123 = scmp.ne.s32.totalorder %s112, %s113
    %p124 = scmp.eq.s32.totalorder %s15, 0
    %p125 = por %p123, %p124
    %p126 = scmp.ne.s32.totalorder %s112, %s113
    %p127 = scmp.eq.s32.totalorder %s16, 1
    %p128 = por %p126, %p127
    %p130 = scmp.ne.s32.totalorder %s113, %s129
    %p131 = scmp.eq.s32.totalorder %s16, 0
    %p132 = por %p130, %p131
    %p133 = scmp.le.s32.totalorder 1, %s10
    %p134 = scmp.lt.s32.totalorder %s10, 3
    %p135 = pnand %p133, %p134
    %p136 = pneg %p135
    // Predicated region
    $region9: #{down_wt_forward.1} parent=5 // pred_check
      _
    $region10: #{down_wt_forward.1} parent=5 // pred_check_branch
      %138 = sbr.rel (%p135) target = $region12
    $region11: #{down_wt_forward.1} parent=5 // pred_region
      %s139 = ssub.s32 %s10, 1
      // Predicated region
      $region13: #{down_wt_forward.1} parent=11 // pred_check
        %p140 = pneg %p57
      $region14: #{down_wt_forward.1} parent=11 // pred_check_branch
        %142 = sbr.rel (%p140) target = $region16
      $region15: #{down_wt_forward.1} parent=11 // pred_region
        _
      $region16: #{down_wt_forward.1} parent=11 // pred_fallthru
        _
      // Predicated region
      $region17: #{down_wt_forward.1} parent=11 // pred_check
        %p143 = pneg %p78
      $region18: #{down_wt_forward.1} parent=11 // pred_check_branch
        %145 = sbr.rel (%p143) target = $region20
      $region19: #{down_wt_forward.1} parent=11 // pred_region
        _
      $region20: #{down_wt_forward.1} parent=11 // pred_fallthru
        _
      // Predicated region
      $region21: #{down_wt_forward.1} parent=11 // pred_check
        %p146 = pneg %p99
      $region22: #{down_wt_forward.1} parent=11 // pred_check_branch
        %148 = sbr.rel (%p146) target = $region24
      $region23: #{down_wt_forward.1} parent=11 // pred_region
        _
      $region24: #{down_wt_forward.1} parent=11 // pred_fallthru
        _
    $region12: #{down_wt_forward.1} parent=5 // pred_fallthru
      _
    %p149 = scmp.lt.s32.totalorder %s10, 2
    // Predicated region
    $region25: #{down_wt_forward.1} parent=5 // pred_check
      %p150 = pneg %p149
    $region26: #{down_wt_forward.1} parent=5 // pred_check_branch
      %152 = sbr.rel (%p150) target = $region28
    $region27: #{down_wt_forward.1} parent=5 // pred_region
      // Predicated region
      $region29: #{down_wt_forward.1} parent=27 // pred_check
        %p153 = pneg %p30
      $region30: #{down_wt_forward.1} parent=27 // pred_check_branch
        %155 = sbr.rel (%p153) target = $region32
      $region31: #{down_wt_forward.1} parent=27 // pred_region
        %s156 = smul.u32 8, %s10
        %p157 = scmp.lt.s32.totalorder %s156, 15
        %s158 = scalar_select %p157, %s156, 15
        %s159 = smul.addr %s158, 4
        %s160 = scalar_lea.vmem %s0, %s159
        %s161 = smul.u32 8, %s10
      $region32: #{down_wt_forward.1} parent=27 // pred_fallthru
        _
    $region28: #{down_wt_forward.1} parent=5 // pred_fallthru
      _
    %p162 = scmp.le.s32.totalorder 1, %s10
    %p163 = scmp.lt.s32.totalorder %s10, 3
    %p164 = pnand %p162, %p163
    %p165 = pneg %p164
    // Predicated region
    $region33: #{down_wt_forward.1} parent=5 // pred_check
      _
    $region34: #{down_wt_forward.1} parent=5 // pred_check_branch
      %167 = sbr.rel (%p164) target = $region36
    $region35: #{down_wt_forward.1} parent=5 // pred_region
      %s168 = ssub.s32 %s10, 1
      %s169 = smul.u32 8, %s15
      %p170 = scmp.lt.s32.totalorder %s169, 15
      %s171 = scalar_select %p170, %s169, 15
      %s172 = smul.addr %s171, 4
      %s173 = scalar_lea.vmem %s0, %s172
      %p174 = pneg %p36
      %p175 = pneg %p33
      %p176 = pneg %p57
      %p177 = pneg %p54
      %p178 = pneg %p78
      %p179 = pneg %p75
      %p180 = pneg %p99
      %p181 = pneg %p96
      %p182 = pneg %p125
      %p183 = pneg %p122
      %s184 = smul.u32 8, %s15
      %p185 = scmp.lt.s32.totalorder %s184, 15
      %s186 = scalar_select %p185, %s184, 15
      %s187 = smul.addr %s186, 8
      %s188 = scalar_lea.vmem %s4, %s187
      %s189 = smul.u32 8, %s15
      %p190 = scmp.lt.s32.totalorder %s189, 15
      %s191 = scalar_select %p190, %s189, 15
      %s192 = smul.addr %s191, 4
      %s193 = scalar_lea.vmem %s0, %s192
      %s194 = smul.u32 8, %s15
      %s195 = smul.u32 8, %s15
      %p196 = scmp.lt.s32.totalorder %s195, 15
      %s197 = scalar_select %p196, %s195, 15
      %s198 = smul.addr %s197, 8
      %s199 = scalar_lea.vmem %s4, %s198
      %s200 = smul.u32 8, %s15
      %v202 = vld [vmem:[%s193] sm:$0xf]
      %v203 = vld [vmem:[%s193 + $0x4] sm:$0xf]
      %v204 = vld [vmem:[%s193 + $0x8] sm:$0xf]
      %v205 = vld [vmem:[%s193 + $0xc] sm:$0xf]
      %v206 = vld [vmem:[%s193 + $0x10] sm:$0xf]
      %v207 = vld [vmem:[%s193 + $0x14] sm:$0xf]
      %v208 = vld [vmem:[%s193 + $0x18] sm:$0xf]
      %v209 = vld [vmem:[%s193 + $0x1c] sm:$0xf]
      %v210 = vld [vmem:[%s1] sm:$0xf]
      %v211 = vld [vmem:[%s1 + $0x4] sm:$0xf]
      %v220 = vunpack.c.l.b16 %v202
      %v221 = vunpack.c.l.b16 %v203
      %v222 = vunpack.c.l.b16 %v204
      %v223 = vunpack.c.l.b16 %v205
      %v224 = vunpack.c.l.b16 %v206
      %v225 = vunpack.c.l.b16 %v207
      %v226 = vunpack.c.l.b16 %v208
      %v227 = vunpack.c.l.b16 %v209
      %v228 = vpack.c.b16 %v221, %v220
      %v229 = vpack.c.b16 %v223, %v222
      %v230 = vpack.c.b16 %v225, %v224
      %v231 = vpack.c.b16 %v227, %v226
      %v234 = vunpack.c.l.b16 %v210
      %v235 = vunpack.c.l.b16 %v211
      %v236 = vpack.c.b16 %v235, %v234
      %vm238 = vcmask 130048
      %v240 = vsel %vm238, %v228, 0
      %v243 = vsel %vm238, %v229, 0
      %v246 = vsel %vm238, %v230, 0
      %v249 = vsel %vm238, %v231, 0
      %251 = vmatprep.subr.bf16.mxu0 0
      %252 = vmatpush1.bf16.msra.mxu0 0
      %253 = vmatprep.subr.bf16.mxu0 0
      %254 = vmatpush1.bf16.msra.mxu0 0
      %255 = vmatprep.subr.bf16.mxu0 0
      %256 = vmatpush1.bf16.msra.mxu0 0
      %257 = vmatprep.subr.bf16.mxu0 0
      %258 = vmatpush1.bf16.msra.mxu0 0
      %259 = vmatprep.subr.bf16.mxu0 0
      %260 = vmatpush1.bf16.msra.mxu0 0
      %261 = vmatprep.subr.bf16.mxu0 0
      %262 = vmatpush1.bf16.msra.mxu0 0
      %263 = vmatprep.subr.bf16.mxu0 0
      %264 = vmatpush1.bf16.msra.mxu0 0
      %265 = vmatprep.subr.bf16.mxu0 0
      %266 = vmatpush1.bf16.msra.mxu0 %v236
      %267 = vmatprep.subr.bf16.mxu0 0
      %268 = vmatpush2.bf16.msra.mxu0 0
      %269 = vmatprep.subr.bf16.mxu0 0
      %270 = vmatpush2.bf16.msra.mxu0 0
      %271 = vmatprep.subr.bf16.mxu0 0
      %272 = vmatpush2.bf16.msra.mxu0 0
      %273 = vmatprep.subr.bf16.mxu0 0
      %274 = vmatpush2.bf16.msra.mxu0 0
      %275 = vmatprep.subr.bf16.mxu0 0
      %276 = vmatpush2.bf16.msra.mxu0 0
      %277 = vmatprep.subr.bf16.mxu0 0
      %278 = vmatpush2.bf16.msra.mxu0 0
      %279 = vmatprep.subr.bf16.mxu0 0
      %280 = vmatpush2.bf16.msra.mxu0 0
      %281 = vmatprep.subr.bf16.mxu0 0
      %282 = vmatpush2.bf16.msra.mxu0 0
      %283 = vmatprep.mubr.bf16.mxu0 0
      %284 = vmatmul.mubr.bf16.gmra.mxu0 %v240
      %v285 = vpop.f32.mrf.mxu0
      %v286 = vadd.f32 0.0, %v285
      %v287 = vpop.f32.mrf.mxu0
      %v288 = vpop.f32.mrf.mxu0
      %v289 = vadd.f32 0.0, %v288
      %v290 = vpop.f32.mrf.mxu0
      %291 = vmatprep.mubr.bf16.mxu0 0
      %292 = vmatmul.mubr.bf16.gmra.mxu0 %v243
      %v293 = vpop.f32.mrf.mxu0
      %v294 = vadd.f32 0.0, %v293
      %v295 = vpop.f32.mrf.mxu0
      %v296 = vpop.f32.mrf.mxu0
      %v297 = vadd.f32 0.0, %v296
      %v298 = vpop.f32.mrf.mxu0
      %299 = vmatprep.mubr.bf16.mxu0 0
      %300 = vmatmul.mubr.bf16.gmra.mxu0 %v246
      %v301 = vpop.f32.mrf.mxu0
      %v302 = vadd.f32 0.0, %v301
      %v303 = vpop.f32.mrf.mxu0
      %v304 = vpop.f32.mrf.mxu0
      %v305 = vadd.f32 0.0, %v304
      %v306 = vpop.f32.mrf.mxu0
      %307 = vmatprep.mubr.bf16.mxu0 0
      %308 = vmatmul.mubr.bf16.gmra.mxu0 %v249
      %v309 = vpop.f32.mrf.mxu0
      %v310 = vadd.f32 0.0, %v309
      %v311 = vpop.f32.mrf.mxu0
      %v312 = vpop.f32.mrf.mxu0
      %v313 = vadd.f32 0.0, %v312
      %v314 = vpop.f32.mrf.mxu0
      %315 = vdwg.mxu0
      %v316 = vld [vmem:[%s2] sm:$0x1]
      %v318 = vlaneseq
      %v319 = vshrl.u32 %v318, 7
      %v320 = vsub.s32 0, %v319
      %v321 = vrot.slane %v316, %v320
      %v323 = vmul.f32 %v286, %v321
      %v324 = vmul.f32 %v289, %v321
      %v325 = vmul.f32 %v294, %v321
      %v326 = vmul.f32 %v297, %v321
      %v327 = vmul.f32 %v302, %v321
      %v328 = vmul.f32 %v305, %v321
      %v329 = vmul.f32 %v310, %v321
      %v330 = vmul.f32 %v313, %v321
      %v331 = vld [vmem:[%s3] sm:$0x1]
      %v333 = vlaneseq
      %v334 = vshrl.u32 %v333, 7
      %v335 = vsub.s32 0, %v334
      %v336 = vrot.slane %v331, %v335
      %v338 = vadd.f32 %v323, %v336
      %v339 = vadd.f32 %v324, %v336
      %v340 = vadd.f32 %v325, %v336
      %v341 = vadd.f32 %v326, %v336
      %v342 = vadd.f32 %v327, %v336
      %v343 = vadd.f32 %v328, %v336
      %v344 = vadd.f32 %v329, %v336
      %v345 = vadd.f32 %v330, %v336
      %v346 = vmax.f32 %v338, 0.0
      %v347 = vmax.f32 %v339, 0.0
      %v348 = vmax.f32 %v340, 0.0
      %v349 = vmax.f32 %v341, 0.0
      %v350 = vmax.f32 %v342, 0.0
      %v351 = vmax.f32 %v343, 0.0
      %v352 = vmax.f32 %v344, 0.0
      %v353 = vmax.f32 %v345, 0.0
      %354 = vst [vmem:[%s199] sm:$0xff] %v346
      %355 = vst [vmem:[%s199 + $0x8] sm:$0xff] %v347
      %356 = vst [vmem:[%s199 + $0x10] sm:$0xff] %v348
      %357 = vst [vmem:[%s199 + $0x18] sm:$0xff] %v349
      %358 = vst [vmem:[%s199 + $0x20] sm:$0xff] %v350
      %359 = vst [vmem:[%s199 + $0x28] sm:$0xff] %v351
      %360 = vst [vmem:[%s199 + $0x30] sm:$0xff] %v352
      %361 = vst [vmem:[%s199 + $0x38] sm:$0xff] %v353
      %s362 = smul.u32 8, %s15
      %p363 = scmp.lt.s32.totalorder %s362, 15
      %s364 = scalar_select %p363, %s362, 15
      %s365 = smul.addr %s364, 8
      %s366 = scalar_lea.vmem %s4, %s365
      // Predicated region
      $region37: #{down_wt_forward.1} parent=35 // pred_check
        %p367 = pneg %p122
      $region38: #{down_wt_forward.1} parent=35 // pred_check_branch
        %369 = sbr.rel (%p367) target = $region40
      $region39: #{down_wt_forward.1} parent=35 // pred_region
        %s370 = smul.u32 8, %s15
      $region40: #{down_wt_forward.1} parent=35 // pred_fallthru
        _
    $region36: #{down_wt_forward.1} parent=5 // pred_fallthru
      _
    %p371 = scmp.le.s32.totalorder 2, %s10
    // Predicated region
    $region41: #{down_wt_forward.1} parent=5 // pred_check
      %p372 = pneg %p371
    $region42: #{down_wt_forward.1} parent=5 // pred_check_branch
      %374 = sbr.rel (%p372) target = $region44
    $region43: #{down_wt_forward.1} parent=5 // pred_region
      %s375 = ssub.s32 %s10, 2
      // Predicated region
      $region45: #{down_wt_forward.1} parent=43 // pred_check
        %p376 = pneg %p128
      $region46: #{down_wt_forward.1} parent=43 // pred_check_branch
        %378 = sbr.rel (%p376) target = $region48
      $region47: #{down_wt_forward.1} parent=43 // pred_region
        %s379 = smul.u32 8, %s16
        %p380 = scmp.lt.s32.totalorder %s379, 15
        %s381 = scalar_select %p380, %s379, 15
        %s382 = smul.addr %s381, 8
        %s383 = scalar_lea.vmem %s4, %s382
      $region48: #{down_wt_forward.1} parent=43 // pred_fallthru
        _
    $region44: #{down_wt_forward.1} parent=5 // pred_fallthru
      _
  $region6: #{down_wt_forward.1} parent=0 // loop_footer
    %s14 = sadd.s32 1, %s10
  $region7: #{down_wt_forward.1} parent=0 // loop_footer_branch
    %9 = sbr.rel target = $region3
  $region8: #{down_wt_forward.1} parent=0 // loop_exit
    _

</llo_original>
